<compile_context>
chip_gen: v7x
topology: tpu7x:2x2x1
jax: 0.10.0
libtpu: 0.0.40
codegen_flags: <defaults>
</compile_context>

<pallas_src>
import math

import jax
import jax.numpy as jnp
from jax.experimental import pallas as pl
from jax.experimental.pallas import tpu as pltpu

LN_EPS = 1e-5  # nn.LayerNorm default


def _round_up(a: int, b: int) -> int:
    return ((a + b - 1) // b) * b


def _vmem_capacity_bytes() -> int:
    """Per-generation VMEM capacity; conservative (v7x-sized) fallback."""
    try:
        info = pltpu.get_tpu_info()
        cap = getattr(info, "vmem_capacity_bytes", None)
        if cap:
            return int(cap)
    except Exception:
        pass
    return 64 << 20


def prenorm_kernel(x_ref, gamma_ref, beta_ref, w_ref, b_ref, o_ref, y_ref):
    # x_ref: (TM, D) row tile.   gamma/beta: (1, D).
    # w_ref: (TN, D) weight tile in torch (D_out, D) layout.   b_ref: (1, TN).
    # o_ref: (TM, TN).   y_ref: VMEM scratch (TM, D) holding normalized rows.
    j = pl.program_id(1)  # innermost: output-column tile index

    @pl.when(j == 0)
    def _():
        # LayerNorm in f32 (biased variance, matches torch.nn.LayerNorm).
        x = x_ref[...].astype(jnp.float32)
        mean = jnp.mean(x, axis=-1, keepdims=True)
        centered = x - mean
        var = jnp.mean(centered * centered, axis=-1, keepdims=True)
        inv_std = jax.lax.rsqrt(var + LN_EPS)
        gamma = gamma_ref[...].astype(jnp.float32)
        beta = beta_ref[...].astype(jnp.float32)
        y = centered * inv_std * gamma + beta
        y_ref[...] = y.astype(y_ref.dtype)

    # fn = Linear: y @ W^T + b.  Contract last dims directly (weight stays in
    # native layout/dtype); accumulate in f32 on the MXU.
    out = jax.lax.dot_general(
        y_ref[...], w_ref[...],
        dimension_numbers=(((1,), (1,)), ((), ())),
        preferred_element_type=jnp.float32,
    )
    out = out + b_ref[...].astype(jnp.float32)
    o_ref[...] = out.astype(o_ref.dtype)


def prenorm_linear(x, gamma, beta, weight, bias, *, tile_rows=256, tile_n=None):
    """PreNorm(dim, Linear) forward.

    x: (..., D). gamma/beta: (D,). weight: (D_out, D) torch-style. bias: (D_out,).
    Returns (..., D_out).
    """
    lead_shape = x.shape[:-1]
    D = x.shape[-1]
    D_out, D_in = weight.shape
    assert D_in == D

    M = int(math.prod(lead_shape)) if lead_shape else 1
    x2d = x.reshape(M, D)

    itemsize_x = jnp.dtype(x.dtype).itemsize
    itemsize_w = jnp.dtype(weight.dtype).itemsize

    # Lane-dense output: pad D_out to a multiple of 128 (zero weight rows and
    # zero bias -> padded columns are exactly zero and sliced off afterwards).
    D_out_pad = _round_up(D_out, 128)

    # Per-generation VMEM budget, leaving ~25% headroom for compiler scratch.
    vmem_cap = _vmem_capacity_bytes()
    budget = max(32 << 20, int(vmem_cap * 0.75))

    def footprint(tm, tn):
        return (2 * tm * D * itemsize_x        # x tile (double-buffered)
                + tm * D * itemsize_w          # normalized-row VMEM scratch
                + 4 * tm * D * 4               # in-kernel f32 LN temporaries
                + 2 * tn * D * itemsize_w      # weight tile (double-buffered)
                + 2 * tm * tn * itemsize_x     # output tile (double-buffered)
                + tm * tn * 4                  # f32 matmul result
                + 8 * (D + tn) * 4             # gamma/beta/bias (+ casts)
                + (1 << 20))                   # slack

    # Row tile: big (amortize per-grid-step overhead), sublane-packed for the
    # dtype, and shrunk before the VMEM request would ever exceed the cap.
    sub = max(8, 32 // itemsize_x)             # 8 f32 / 16 bf16 / 32 int8-fp8
    tm = min(_round_up(tile_rows, sub), _round_up(M, sub))
    while tm > sub and footprint(tm, min(128, D_out_pad)) > budget:
        new_tm = max(sub, _round_up(tm // 2, sub))
        if new_tm == tm:
            break
        tm = new_tm

    # Output-column tile: whole padded D_out if it fits (weight resident,
    # n_tiles == 1), else largest lane-dense candidate that fits, else 128.
    if tile_n is not None:
        tn = tile_n
        assert D_out_pad % tn == 0 and tn % 128 == 0
    elif footprint(tm, D_out_pad) <= budget:
        tn = D_out_pad
    else:
        tn = 128
        for cand in (2048, 1024, 512, 256):
            if D_out_pad % cand == 0 and footprint(tm, cand) <= budget:
                tn = cand
                break

    M_pad = _round_up(M, tm)
    if M_pad != M:
        x2d = jnp.pad(x2d, ((0, M_pad - M), (0, 0)))  # zero rows -> finite LN

    w = weight
    b = bias
    if D_out_pad != D_out:
        w = jnp.pad(w, ((0, D_out_pad - D_out), (0, 0)))
        b = jnp.pad(b, ((0, D_out_pad - D_out),))

    gamma2d = gamma.reshape(1, D)
    beta2d = beta.reshape(1, D)
    bias2d = b.reshape(1, D_out_pad)

    m_tiles = M_pad // tm
    n_tiles = D_out_pad // tn
    # D_out axis innermost: x tile and LN scratch stay resident across j.
    grid = (m_tiles, n_tiles)

    vmem_limit = int(min(budget, max(32 << 20, int(1.25 * footprint(tm, tn)))))

    cost = pl.CostEstimate(
        flops=2 * M_pad * D * D_out_pad,
        transcendentals=0,
        bytes_accessed=(M_pad * D * itemsize_x            # x read once
                        + D * D_out_pad * itemsize_w      # weight read once
                        + M_pad * D_out_pad * itemsize_x),  # output written once
    )

    out2d = pl.pallas_call(
        prenorm_kernel,
        out_shape=jax.ShapeDtypeStruct((M_pad, D_out_pad), x.dtype),
        grid_spec=pltpu.PrefetchScalarGridSpec(
            num_scalar_prefetch=0,
            grid=grid,
            in_specs=[
                pl.BlockSpec((tm, D), lambda i, j: (i, 0)),   # x rows (resident over j)
                pl.BlockSpec((1, D), lambda i, j: (0, 0)),    # gamma
                pl.BlockSpec((1, D), lambda i, j: (0, 0)),    # beta
                pl.BlockSpec((tn, D), lambda i, j: (j, 0)),   # weight tile (torch layout)
                pl.BlockSpec((1, tn), lambda i, j: (0, j)),   # bias tile
            ],
            out_specs=pl.BlockSpec((tm, tn), lambda i, j: (i, j)),
            scratch_shapes=[pltpu.VMEM((tm, D), weight.dtype)],  # normalized rows
        ),
        compiler_params=pltpu.CompilerParams(
            dimension_semantics=("parallel", "arbitrary"),
            vmem_limit_bytes=vmem_limit,
        ),
        cost_estimate=cost,
    )(x2d, gamma2d, beta2d, w, bias2d)

    out2d = out2d[:M, :D_out]
    return out2d.reshape(*lead_shape, D_out)


def reference(x, gamma, beta, weight, bias):
    x32 = x.astype(jnp.float32)
    mean = jnp.mean(x32, axis=-1, keepdims=True)
    var = jnp.mean((x32 - mean) ** 2, axis=-1, keepdims=True)
    xn = (x32 - mean) * jax.lax.rsqrt(var + LN_EPS)
    y = xn * gamma.astype(jnp.float32) + beta.astype(jnp.float32)
    out = y @ weight.T.astype(jnp.float32) + bias.astype(jnp.float32)
    return out.astype(x.dtype)


if __name__ == "__main__":
    # Small shapes consistent with PreNorm over a (batch, seq, dim) tensor.
    B, N, D = 2, 8, 32

    key = jax.random.PRNGKey(0)
    kx, kw, kb = jax.random.split(key, 3)

    x = jax.random.normal(kx, (B, N, D), dtype=jnp.float32)

    # LayerNorm params (PyTorch default init: weight=1, bias=0)
    gamma = jnp.ones((D,), dtype=jnp.float32)
    beta = jnp.zeros((D,), dtype=jnp.float32)

    # fn = Linear(D, D), deterministic init (torch layout: (D_out, D_in))
    weight = jax.random.normal(kw, (D, D), dtype=jnp.float32) * 0.02
    bias = jax.random.normal(kb, (D,), dtype=jnp.float32) * 0.01

    out = prenorm_linear(x, gamma, beta, weight, bias)
    out = jax.block_until_ready(out)

    ref = reference(x, gamma, beta, weight, bias)
    assert out.shape == (B, N, D)
    assert jnp.allclose(out, ref, atol=1e-4, rtol=1e-4), "mismatch vs reference"

    print("KERNEL_OK")
</pallas_src>

<mosaic_0001>
module attributes {stable_mosaic.version = 11 : i64} {
  func.func @prenorm_kernel(%arg0: i32, %arg1: i32, %arg2: memref<16x32xf32, #tpu.memory_space<vmem>>, %arg3: memref<1x32xf32, #tpu.memory_space<vmem>>, %arg4: memref<1x32xf32, #tpu.memory_space<vmem>>, %arg5: memref<128x32xf32, #tpu.memory_space<vmem>>, %arg6: memref<1x128xf32, #tpu.memory_space<vmem>>, %arg7: memref<16x128xf32, #tpu.memory_space<vmem>>, %arg8: memref<16x32xf32, #tpu.memory_space<vmem>>) attributes {dimension_semantics = [#tpu.dimension_semantics<parallel>, #tpu.dimension_semantics<arbitrary>], iteration_bounds = array<i64: 1, 1>, scalar_prefetch = 0 : i64, scratch_operands = 1 : i64, tpu.core_type = #tpu.core_type<tc>, window_params = [{transform_indices = @transform_0, window_bounds = array<i64: 16, 32>}, {pipeline_mode = #tpu.pipeline_mode<synchronous>, transform_indices = @transform_1, window_bounds = array<i64: 1, 32>}, {pipeline_mode = #tpu.pipeline_mode<synchronous>, transform_indices = @transform_2, window_bounds = array<i64: 1, 32>}, {transform_indices = @transform_3, window_bounds = array<i64: 128, 32>}, {transform_indices = @transform_4, window_bounds = array<i64: 1, 128>}, {transform_indices = @transform_5, window_bounds = array<i64: 16, 128>}]} {
    %c0_i32 = arith.constant 0 : i32
    %0 = arith.cmpi eq, %arg1, %c0_i32 : i32
    %1 = arith.extui %0 : i1 to i32
    %c0_i32_0 = arith.constant 0 : i32
    %2 = arith.cmpi ne, %1, %c0_i32_0 : i32
    scf.if %2 {
      %c0_8 = arith.constant 0 : index
      %c0_9 = arith.constant 0 : index
      %10 = vector.load %arg2[%c0_8, %c0_9] : memref<16x32xf32, #tpu.memory_space<vmem>>, vector<16x32xf32>
      %cst_10 = arith.constant dense<0.000000e+00> : vector<16xf32>
      %11 = vector.multi_reduction <add>, %10, %cst_10 [1] : vector<16x32xf32> to vector<16xf32>
      %12 = vector.shape_cast %11 : vector<16xf32> to vector<16x1xf32>
      %cst_11 = arith.constant 3.200000e+01 : f32
      %13 = vector.broadcast %cst_11 : f32 to vector<16x1xf32>
      %14 = arith.divf %12, %13 : vector<16x1xf32>
      %15 = vector.broadcast %14 : vector<16x1xf32> to vector<16x32xf32>
      %16 = arith.subf %10, %15 : vector<16x32xf32>
      %17 = arith.mulf %16, %16 : vector<16x32xf32>
      %cst_12 = arith.constant dense<0.000000e+00> : vector<16xf32>
      %18 = vector.multi_reduction <add>, %17, %cst_12 [1] : vector<16x32xf32> to vector<16xf32>
      %19 = vector.shape_cast %18 : vector<16xf32> to vector<16x1xf32>
      %cst_13 = arith.constant 3.200000e+01 : f32
      %20 = vector.broadcast %cst_13 : f32 to vector<16x1xf32>
      %21 = arith.divf %19, %20 : vector<16x1xf32>
      %cst_14 = arith.constant 9.99999974E-6 : f32
      %22 = vector.broadcast %cst_14 : f32 to vector<16x1xf32>
      %23 = arith.addf %21, %22 : vector<16x1xf32>
      %24 = math.rsqrt %23 : vector<16x1xf32>
      %c0_15 = arith.constant 0 : index
      %c0_16 = arith.constant 0 : index
      %25 = vector.load %arg3[%c0_15, %c0_16] : memref<1x32xf32, #tpu.memory_space<vmem>>, vector<1x32xf32>
      %c0_17 = arith.constant 0 : index
      %c0_18 = arith.constant 0 : index
      %26 = vector.load %arg4[%c0_17, %c0_18] : memref<1x32xf32, #tpu.memory_space<vmem>>, vector<1x32xf32>
      %27 = vector.broadcast %24 : vector<16x1xf32> to vector<16x32xf32>
      %28 = arith.mulf %16, %27 : vector<16x32xf32>
      %29 = vector.broadcast %25 : vector<1x32xf32> to vector<16x32xf32>
      %30 = arith.mulf %28, %29 : vector<16x32xf32>
      %31 = vector.broadcast %26 : vector<1x32xf32> to vector<16x32xf32>
      %32 = arith.addf %30, %31 : vector<16x32xf32>
      %c0_19 = arith.constant 0 : index
      %c0_20 = arith.constant 0 : index
      %33 = vector.load %arg8[%c0_19, %c0_20] : memref<16x32xf32, #tpu.memory_space<vmem>>, vector<16x32xf32>
      tpu.vector_store %arg8[%c0_19, %c0_20], %32 {strides = array<i32>} : memref<16x32xf32, #tpu.memory_space<vmem>>, vector<16x32xf32>,
    } else {
    }
    %c0 = arith.constant 0 : index
    %c0_1 = arith.constant 0 : index
    %3 = vector.load %arg8[%c0, %c0_1] : memref<16x32xf32, #tpu.memory_space<vmem>>, vector<16x32xf32>
    %c0_2 = arith.constant 0 : index
    %c0_3 = arith.constant 0 : index
    %4 = vector.load %arg5[%c0_2, %c0_3] : memref<128x32xf32, #tpu.memory_space<vmem>>, vector<128x32xf32>
    %cst = arith.constant dense<0.000000e+00> : vector<16x128xf32>
    %5 = tpu.matmul %3, %4, %cst {dimension_numbers = #tpu.dot_dimension_numbers<[1], [1], [0], [0], [0, 0, 1, 0], [], []>} : vector<16x32xf32>, vector<128x32xf32>, vector<16x128xf32> -> vector<16x128xf32>
    %c0_4 = arith.constant 0 : index
    %c0_5 = arith.constant 0 : index
    %6 = vector.load %arg6[%c0_4, %c0_5] : memref<1x128xf32, #tpu.memory_space<vmem>>, vector<1x128xf32>
    %7 = vector.broadcast %6 : vector<1x128xf32> to vector<16x128xf32>
    %8 = arith.addf %5, %7 : vector<16x128xf32>
    %c0_6 = arith.constant 0 : index
    %c0_7 = arith.constant 0 : index
    %9 = vector.load %arg7[%c0_6, %c0_7] : memref<16x128xf32, #tpu.memory_space<vmem>>, vector<16x128xf32>
    tpu.vector_store %arg7[%c0_6, %c0_7], %8 {strides = array<i32>} : memref<16x128xf32, #tpu.memory_space<vmem>>, vector<16x128xf32>,
    return
  }
  func.func @transform_0(%arg0: i32, %arg1: i32) -> (i32, i32) {
    %c0_i32 = arith.constant 0 : i32
    %c0_i32_0 = arith.constant 0 : i32
    return %arg0, %c0_i32 : i32, i32
  }
  func.func @transform_1(%arg0: i32, %arg1: i32) -> (i32, i32) {
    %c0_i32 = arith.constant 0 : i32
    %c0_i32_0 = arith.constant 0 : i32
    %c0_i32_1 = arith.constant 0 : i32
    return %c0_i32, %c0_i32_0 : i32, i32
  }
  func.func @transform_2(%arg0: i32, %arg1: i32) -> (i32, i32) {
    %c0_i32 = arith.constant 0 : i32
    %c0_i32_0 = arith.constant 0 : i32
    %c0_i32_1 = arith.constant 0 : i32
    return %c0_i32, %c0_i32_0 : i32, i32
  }
  func.func @transform_3(%arg0: i32, %arg1: i32) -> (i32, i32) {
    %c0_i32 = arith.constant 0 : i32
    %c0_i32_0 = arith.constant 0 : i32
    return %arg1, %c0_i32 : i32, i32
  }
  func.func @transform_4(%arg0: i32, %arg1: i32) -> (i32, i32) {
    %c0_i32 = arith.constant 0 : i32
    %c0_i32_0 = arith.constant 0 : i32
    return %c0_i32, %arg1 : i32, i32
  }
  func.func @transform_5(%arg0: i32, %arg1: i32) -> (i32, i32) {
    %c0_i32 = arith.constant 0 : i32
    return %arg0, %arg1 : i32, i32
  }
}

</mosaic_0001>

<llo_original>
// kernel: tpu_custom_call.1
$region0: #{tpu_custom_call.1}
  #allocation0 [shape = 'u32[]', space=smem, size = 0x4, offset = 0x4, fixed_abs, tag = 'smem constant byte address 0x4 - core index']
  #allocation1 [shape = 'u32[144,128]{1,0:T(1,128)}', space=vmem, size = 0x12000, scoped, tag = 'internal scratch']
  #allocation2 [shape = 'f32[16,32]{1,0:T(8,128)}', space=vmem, size = 0x2000, scoped, tag = 'scratch operand']
  %s0 = inlined_call_operand.vmem [shape: f32[16,32], index: 0, kind: input, shape index: {}]
  %s1 = inlined_call_operand.vmem [shape: f32[1,32], index: 1, kind: input, shape index: {}]
  %s2 = inlined_call_operand.vmem [shape: f32[1,32], index: 2, kind: input, shape index: {}]
  %s3 = inlined_call_operand.vmem [shape: f32[128,32], index: 3, kind: input, shape index: {}]
  %s4 = inlined_call_operand.vmem [shape: f32[1,128], index: 4, kind: input, shape index: {}]
  %s5 = inlined_call_operand.hbm [shape: f32[16,128], index: 5, kind: output, shape index: {}]
  %s6 = sld [smem:[#allocation0]]
  $region34: #{tpu_custom_call.1} parent=0
    _
  %s8 = ssub.s32 1, %s6
  %s9 = scalar_select 0, %s8, %s6
  $region1: #{tpu_custom_call.1} parent=0
    #allocation3 [shape = 'u8[8192]{0}', space=vmem, size = 0x2000, scoped, tag = 'output window, operand 0, single buffered']
    #allocation4 [shape = 's32[1]{0}', space=sflag, size = 0x4, scoped, tag = 'scoped memory for tpu_custom_call.1']
    %10 = vsyncpa [#allocation4], 0
    // Predicated region
    $region2: #{tpu_custom_call.1} parent=1 // pred_check
      _
    $region3: #{tpu_custom_call.1} parent=1 // pred_check_branch
      %12 = sbr.rel (0) target = $region5
    $region4: #{tpu_custom_call.1} parent=1 // pred_region
      _
    $region5: #{tpu_custom_call.1} parent=1 // pred_fallthru
      _
    // Predicated region
    $region6: #{tpu_custom_call.1} parent=1 // pred_check
      _
    $region7: #{tpu_custom_call.1} parent=1 // pred_check_branch
      %14 = sbr.rel (0) target = $region9
    $region8: #{tpu_custom_call.1} parent=1 // pred_region
      _
    $region9: #{tpu_custom_call.1} parent=1 // pred_fallthru
      _
    // Predicated region
    $region10: #{tpu_custom_call.1} parent=1 // pred_check
      _
    $region11: #{tpu_custom_call.1} parent=1 // pred_check_branch
      %16 = sbr.rel (0) target = $region13
    $region12: #{tpu_custom_call.1} parent=1 // pred_region
      _
    $region13: #{tpu_custom_call.1} parent=1 // pred_fallthru
      _
    // Predicated region
    $region14: #{tpu_custom_call.1} parent=1 // pred_check
      _
    $region15: #{tpu_custom_call.1} parent=1 // pred_check_branch
      %18 = sbr.rel (0) target = $region17
    $region16: #{tpu_custom_call.1} parent=1 // pred_region
      _
    $region17: #{tpu_custom_call.1} parent=1 // pred_fallthru
      _
    // Predicated region
    $region18: #{tpu_custom_call.1} parent=1 // pred_check
      _
    $region19: #{tpu_custom_call.1} parent=1 // pred_check_branch
      %20 = sbr.rel (0) target = $region21
    $region20: #{tpu_custom_call.1} parent=1 // pred_region
      _
    $region21: #{tpu_custom_call.1} parent=1 // pred_fallthru
      _
    %p21 = scmp.eq.s32.totalorder 0, 0
    // Predicated region
    $region22: #{tpu_custom_call.1} parent=1 // pred_check
      %p22 = pneg %p21
    $region23: #{tpu_custom_call.1} parent=1 // pred_check_branch
      %24 = sbr.rel (%p22) target = $region25
    $region24: #{tpu_custom_call.1} parent=1 // pred_region
      %v25 = vld [vmem:[%s0] sm:$0xff]
      %v26 = vld [vmem:[%s0 + $0x8] sm:$0xff]
      %vm27 = vcmask 261120
      %v28 = vsel %vm27, %v25, 0.0
      %29 = vadd.xlane.f32.xlu0 %v28
      %v30 = vpop.xlane.xlu0 %29
      %v31 = vsel %vm27, %v26, 0.0
      %32 = vadd.xlane.f32.xlu0 %v31
      %v33 = vpop.xlane.xlu0 %32
      %v34 = vrcp.pop 32.0
      %v35 = vmul.f32 %v30, %v34
      %v36 = vmul.f32 %v33, %v34
      %v37 = vsub.f32 %v25, %v35
      %v38 = vsub.f32 %v26, %v36
      %v39 = vmul.f32 %v37, %v37
      %v40 = vmul.f32 %v38, %v38
      %v41 = vsel %vm27, %v39, 0.0
      %42 = vadd.xlane.f32.xlu0 %v41
      %v43 = vpop.xlane.xlu0 %42
      %v44 = vsel %vm27, %v40, 0.0
      %45 = vadd.xlane.f32.xlu0 %v44
      %v46 = vpop.xlane.xlu0 %45
      %v47 = vmul.f32 %v43, %v34
      %v48 = vmul.f32 %v46, %v34
      %v49 = vadd.f32 %v47, 1e-05
      %v50 = vadd.f32 %v48, 1e-05
      %v51 = vrsqrt.pop %v49
      %v52 = vrsqrt.pop %v50
      %v53 = vld [vmem:[%s1] sm:$0x1]
      %v54 = vld [vmem:[%s2] sm:$0x1]
      %v55 = vmul.f32 %v37, %v51
      %v56 = vmul.f32 %v38, %v52
      %v58 = vlaneseq
      %v59 = vshrl.u32 %v58, 7
      %v60 = vsub.s32 0, %v59
      %v61 = vrot.slane %v53, %v60
      %v63 = vmul.f32 %v55, %v61
      %v64 = vmul.f32 %v56, %v61
      %v66 = vlaneseq
      %v67 = vshrl.u32 %v66, 7
      %v68 = vsub.s32 0, %v67
      %v69 = vrot.slane %v54, %v68
      %v71 = vadd.f32 %v63, %v69
      %v72 = vadd.f32 %v64, %v69
      %73 = vst.msk [vmem:[#allocation2] sm:$0xff] %vm27, %v71
      %74 = vst.msk [vmem:[#allocation2 + $0x8] sm:$0xff] %vm27, %v72
    $region25: #{tpu_custom_call.1} parent=1 // pred_fallthru
      _
    %v75 = vld [vmem:[#allocation2] sm:$0xff]
    %v76 = vld [vmem:[#allocation2 + $0x8] sm:$0xff]
    %v77 = vld [vmem:[%s3] sm:$0xff]
    %v78 = vld [vmem:[%s3 + $0x8] sm:$0xff]
    %v79 = vld [vmem:[%s3 + $0x10] sm:$0xff]
    %v80 = vld [vmem:[%s3 + $0x18] sm:$0xff]
    %v81 = vld [vmem:[%s3 + $0x20] sm:$0xff]
    %v82 = vld [vmem:[%s3 + $0x28] sm:$0xff]
    %v83 = vld [vmem:[%s3 + $0x30] sm:$0xff]
    %v84 = vld [vmem:[%s3 + $0x38] sm:$0xff]
    %v85 = vld [vmem:[%s3 + $0x40] sm:$0xff]
    %v86 = vld [vmem:[%s3 + $0x48] sm:$0xff]
    %v87 = vld [vmem:[%s3 + $0x50] sm:$0xff]
    %v88 = vld [vmem:[%s3 + $0x58] sm:$0xff]
    %v89 = vld [vmem:[%s3 + $0x60] sm:$0xff]
    %v90 = vld [vmem:[%s3 + $0x68] sm:$0xff]
    %v91 = vld [vmem:[%s3 + $0x70] sm:$0xff]
    %v92 = vld [vmem:[%s3 + $0x78] sm:$0xff]
    %v93 = vld [vmem:[%s4] sm:$0x1]
    %v95 = vlaneseq
    %v96 = vshrl.u32 %v95, 7
    %v97 = vsub.s32 0, %v96
    %v98 = vrot.slane %v93, %v97
    %vm100 = vcmask 261120
    %v102 = vsel %vm100, %v75, 0
    %v105 = vsel %vm100, %v76, 0
    %v108 = vsel %vm100, %v77, 0
    %v111 = vsel %vm100, %v78, 0
    %v114 = vsel %vm100, %v79, 0
    %v117 = vsel %vm100, %v80, 0
    %v120 = vsel %vm100, %v81, 0
    %v123 = vsel %vm100, %v82, 0
    %v126 = vsel %vm100, %v83, 0
    %v129 = vsel %vm100, %v84, 0
    %v132 = vsel %vm100, %v85, 0
    %v135 = vsel %vm100, %v86, 0
    %v138 = vsel %vm100, %v87, 0
    %v141 = vsel %vm100, %v88, 0
    %v144 = vsel %vm100, %v89, 0
    %v147 = vsel %vm100, %v90, 0
    %v150 = vsel %vm100, %v91, 0
    %v153 = vsel %vm100, %v92, 0
    %155 = vmatprep.subr.mxu0 0.0
    %156 = vmatpush1.xpose.msra.mxu0 %v108
    %157 = vmatprep.subr.mxu0 0.0
    %158 = vmatpush1.xpose.msra.mxu0 %v111
    %159 = vmatprep.subr.mxu0 0.0
    %160 = vmatpush1.xpose.msra.mxu0 %v114
    %161 = vmatprep.subr.mxu0 0.0
    %162 = vmatpush1.xpose.msra.mxu0 %v117
    %163 = vmatprep.subr.mxu0 0.0
    %164 = vmatpush1.xpose.msra.mxu0 %v120
    %165 = vmatprep.subr.mxu0 0.0
    %166 = vmatpush1.xpose.msra.mxu0 %v123
    %167 = vmatprep.subr.mxu0 0.0
    %168 = vmatpush1.xpose.msra.mxu0 %v126
    %169 = vmatprep.subr.mxu0 0.0
    %170 = vmatpush1.xpose.msra.mxu0 %v129
    %171 = vmatprep.subr.mxu0 0.0
    %172 = vmatpush1.xpose.msra.mxu0 %v132
    %173 = vmatprep.subr.mxu0 0.0
    %174 = vmatpush1.xpose.msra.mxu0 %v135
    %175 = vmatprep.subr.mxu0 0.0
    %176 = vmatpush1.xpose.msra.mxu0 %v138
    %177 = vmatprep.subr.mxu0 0.0
    %178 = vmatpush1.xpose.msra.mxu0 %v141
    %179 = vmatprep.subr.mxu0 0.0
    %180 = vmatpush1.xpose.msra.mxu0 %v144
    %181 = vmatprep.subr.mxu0 0.0
    %182 = vmatpush1.xpose.msra.mxu0 %v147
    %183 = vmatprep.subr.mxu0 0.0
    %184 = vmatpush1.xpose.msra.mxu0 %v150
    %185 = vmatprep.subr.mxu0 0.0
    %186 = vmatpush1.xpose.msra.mxu0 %v153
    %187 = vmatprep.subr.mxu0 0.0
    %188 = vmatpush1.xpose.msra.mxu0 0.0
    %189 = vmatprep.subr.mxu0 0.0
    %190 = vmatpush1.xpose.msra.mxu0 0.0
    %191 = vmatprep.subr.mxu0 0.0
    %192 = vmatpush1.xpose.msra.mxu0 0.0
    %193 = vmatprep.subr.mxu0 0.0
    %194 = vmatpush1.xpose.msra.mxu0 0.0
    %195 = vmatprep.subr.mxu0 0.0
    %196 = vmatpush1.xpose.msra.mxu0 0.0
    %197 = vmatprep.subr.mxu0 0.0
    %198 = vmatpush1.xpose.msra.mxu0 0.0
    %199 = vmatprep.subr.mxu0 0.0
    %200 = vmatpush1.xpose.msra.mxu0 0.0
    %201 = vmatprep.subr.mxu0 0.0
    %202 = vmatpush1.xpose.msra.mxu0 0.0
    %203 = vmatprep.subr.mxu0 0.0
    %204 = vmatpush1.xpose.msra.mxu0 0.0
    %205 = vmatprep.subr.mxu0 0.0
    %206 = vmatpush1.xpose.msra.mxu0 0.0
    %207 = vmatprep.subr.mxu0 0.0
    %208 = vmatpush1.xpose.msra.mxu0 0.0
    %209 = vmatprep.subr.mxu0 0.0
    %210 = vmatpush1.xpose.msra.mxu0 0.0
    %211 = vmatprep.subr.mxu0 0.0
    %212 = vmatpush1.xpose.msra.mxu0 0.0
    %213 = vmatprep.subr.mxu0 0.0
    %214 = vmatpush1.xpose.msra.mxu0 0.0
    %215 = vmatprep.subr.mxu0 0.0
    %216 = vmatpush1.xpose.msra.mxu0 0.0
    %217 = vmatprep.subr.mxu0 0.0
    %218 = vmatpush1.xpose.msra.mxu0 0.0
    %219 = vmatprep.mubr.f32.mxu0 0.0
    %220 = vmatmul.mubr.f32.gmra.mrb[0].mxu0 %v102
    %v221 = vpop.f32.mrb[0].mxu0
    %v222 = vadd.f32 %v98, %v221
    %v223 = vpop.f32.mrb[0].mxu0
    %224 = vmatprep.mubr.f32.mxu0 0.0
    %225 = vmatmul.mubr.f32.gmra.mrb[0].mxu0 %v105
    %v226 = vpop.f32.mrb[0].mxu0
    %v227 = vadd.f32 %v98, %v226
    %v228 = vpop.f32.mrb[0].mxu0
    %229 = vdwg.mxu0
    %230 = vst [vmem:[#allocation3] sm:$0xff] %v222
    %231 = vst [vmem:[#allocation3 + $0x8] sm:$0xff] %v227
    // Predicated region
    $region26: #{tpu_custom_call.1} parent=1 // pred_check
      _
    $region27: #{tpu_custom_call.1} parent=1 // pred_check_branch
      %233 = sbr.rel (0) target = $region29
    $region28: #{tpu_custom_call.1} parent=1 // pred_region
      %s235 = ssub.s32 256, 256
      %236 = vsyncadd [#allocation4], %s235
      %s237 = sshll.u32 [#allocation3], 4
      %s238 = int_to_ptr.vmem [resolvable:$true] %s237
      %243 = dma.vmem_to_hbm [thread:$0]  %s238, 256, %s5, [#allocation4], 128, 128, 8
    $region29: #{tpu_custom_call.1} parent=1 // pred_fallthru
      _
    // Predicated region
    $region30: #{tpu_custom_call.1} parent=1 // pred_check
      _
    $region31: #{tpu_custom_call.1} parent=1 // pred_check_branch
      %245 = sbr.rel (0) target = $region33
    $region32: #{tpu_custom_call.1} parent=1 // pred_region
      %246 = dma.done [#allocation4], 256
    $region33: #{tpu_custom_call.1} parent=1 // pred_fallthru
      _
    %247 = vsyncpa [#allocation4], 1

</llo_original>
